<compile_context>
chip_gen: v5e
topology: v5e:2x2
jax: 0.10.0
libtpu: 0.0.40
codegen_flags: <defaults>
</compile_context>

<pallas_src>
import jax
import jax.numpy as jnp
from jax.experimental import pallas as pl
from jax.experimental.pallas import tpu as pltpu

D_MODEL = 256
HIDDEN = 70
HIDDEN_PAD = 128          # pad 70 -> 128 so every intermediate is lane-dense
CLASS_NUM = 11
SELU_ALPHA = 1.6732632423543772
SELU_SCALE = 1.0507009873554805
BN_EPS = 1e-5
MAX_BLOCK_B = 1024        # cross-gen default (v7x could go 2048, v5e 512-1024)


def _round_up(n, m):
    return ((n + m - 1) // m) * m


def _choose_block_b(B, sub, max_block=MAX_BLOCK_B):
    """Batch tile size.

    Small B: one full-extent tile (block dim == array dim, so no sublane
    constraint and no batch padding). Large B: sublane-aligned tiles with at
    least 2 grid steps so the "parallel" batch axis can feed both v7x
    TensorCores. Ragged last tiles rely on Pallas block overhang (OOB reads are
    unspecified, OOB writes dropped; every row is computed independently, so
    garbage rows never contaminate valid rows).
    """
    if B < 64:
        return B
    return max(sub, min(max_block, _round_up(-(-B // 2), sub)))


# --------------------------------------------------------------------------
# Kernel
# --------------------------------------------------------------------------
def head_kernel(x_ref, w1_ref, b1_ref, w2_ref, b2_ref, o_ref):
    # x block: (TB, S*256). CLS-drop + token-mean + Linear(256->hidden) are all
    # folded into w1_ref (shape (S*256, 128), CLS block zeroed, 1/(S-1) scaled),
    # so pooling is part of one well-shaped MXU matmul (K=S*256, N=128). With a
    # bf16 input the MXU consumes it directly (no full-tile f32 cast).
    h = jnp.dot(x_ref[...], w1_ref[...], preferred_element_type=jnp.float32)
    h = h + b1_ref[...]

    # SELU; exp only sees non-positive values (no inf in the discarded branch).
    h = SELU_SCALE * jnp.where(
        h > 0.0, h, SELU_ALPHA * (jnp.exp(jnp.minimum(h, 0.0)) - 1.0))

    # BatchNorm1d(70) (eval mode) is pre-folded into w2/b2.
    # Linear(hidden -> class_num)
    logits = jnp.dot(h, w2_ref[...],
                     preferred_element_type=jnp.float32) + b2_ref[...]

    # Softmax(dim=-1), numerically stable.
    m = jnp.max(logits, axis=-1, keepdims=True)
    e = jnp.exp(logits - m)
    o_ref[...] = (e / jnp.sum(e, axis=-1, keepdims=True)).astype(o_ref.dtype)


# --------------------------------------------------------------------------
# Wrapper
# --------------------------------------------------------------------------
def trans_downstream_head(x, w1_fused, b1, w2, b2, *, block_b=None):
    """x: (B, S, D_MODEL) encoder output (f32 or bf16 -- bf16 halves HBM traffic).

    Returns (B, CLASS_NUM) softmax probabilities in float32.
    """
    B, S, D = x.shape
    assert D == D_MODEL
    K = S * D_MODEL
    assert w1_fused.shape == (K, HIDDEN_PAD), "w1_fused must be built for this S"

    # Keep the first matmul MXU-native (bf16 x bf16 or f32 x f32).
    if w1_fused.dtype != x.dtype:
        w1_fused = w1_fused.astype(x.dtype)

    # Free metadata reshape: (B, S, 256) -> (B, S*256). HBM layout is identical,
    # but the VMEM block becomes one dense (block_b, 18*128) rectangle instead
    # of block_b separate (9,256) slabs padded to 16 sublanes each.
    x2 = x.reshape(B, K)

    itemsize = jnp.dtype(x.dtype).itemsize
    sub = max(8, 32 // itemsize)          # sublane multiple: 8 (f32) / 16 (bf16)
    if block_b is None:
        block_b = _choose_block_b(B, sub)
    block_b = max(1, min(block_b, B))     # never exceed the array extent
    grid = (pl.cdiv(B, block_b),)         # ragged last tile handled by overhang

    # VMEM accounting with the true (sublane/lane-rounded) buffer footprints.
    eff_b = _round_up(block_b, sub)
    x_buf = eff_b * K * itemsize
    out_buf = eff_b * _round_up(CLASS_NUM, 128) * 4
    w_bytes = sum(int(a.size) * jnp.dtype(a.dtype).itemsize
                  for a in (w1_fused, b1, w2, b2))
    vmem_limit = int(min(
        max(2 * (x_buf + out_buf) + 2 * w_bytes + (4 << 20), 16 << 20),
        48 << 20))                        # headroom under v7x's 64 MiB VMEM

    cost = pl.CostEstimate(
        flops=int(2 * B * (K * HIDDEN_PAD + HIDDEN_PAD * CLASS_NUM)),
        transcendentals=int(B * (HIDDEN_PAD + CLASS_NUM)),
        bytes_accessed=int(B * K * itemsize + w_bytes + B * CLASS_NUM * 4))

    return pl.pallas_call(
        head_kernel,
        out_shape=jax.ShapeDtypeStruct((B, CLASS_NUM), jnp.float32),
        grid=grid,
        in_specs=[
            pl.BlockSpec((block_b, K), lambda i: (i, 0)),
            # Weights/biases: constant block index -> DMA'd once, stay resident.
            pl.BlockSpec((K, HIDDEN_PAD), lambda i: (0, 0)),
            pl.BlockSpec((1, HIDDEN_PAD), lambda i: (0, 0)),
            pl.BlockSpec((HIDDEN_PAD, CLASS_NUM), lambda i: (0, 0)),
            pl.BlockSpec((1, CLASS_NUM), lambda i: (0, 0)),
        ],
        out_specs=pl.BlockSpec((block_b, CLASS_NUM), lambda i: (i, 0)),
        compiler_params=pltpu.CompilerParams(
            dimension_semantics=("parallel",),
            vmem_limit_bytes=vmem_limit),
        cost_estimate=cost,
    )(x2, w1_fused, b1, w2, b2)


# --------------------------------------------------------------------------
# Parameter preparation: fold CLS-drop + mean into W1, eval-mode BN into W2/b2,
# pad hidden 70 -> 128. Raw params use PyTorch layouts: w* are (out, in).
# --------------------------------------------------------------------------
def prepare_params(raw, seq_len, dtype=jnp.float32):
    w1 = raw["w1"].T.astype(jnp.float32)                 # (256, 70)
    b1 = raw["b1"].astype(jnp.float32)                   # (70,)
    w2 = raw["w2"].T.astype(jnp.float32)                 # (70, 11)
    b2 = raw["b2"].astype(jnp.float32)                   # (11,)

    scale = raw["gamma"] * jax.lax.rsqrt(raw["rvar"] + BN_EPS)     # (70,)
    shift = raw["beta"] - raw["rmean"] * scale                     # (70,)
    w2_f = w2 * scale[:, None]                                     # (70, 11)
    b2_f = b2 + shift @ w2                                         # (11,)

    pad = HIDDEN_PAD - HIDDEN
    w1_p = jnp.pad(w1, ((0, 0), (0, pad)))                         # (256, 128)
    # Fused W1: tiled over the sequence, scaled by 1/(S-1), CLS block zeroed.
    # NOTE: rebuild if the sequence length S changes.
    w1_fused = jnp.tile(w1_p, (seq_len, 1)) * (1.0 / (seq_len - 1))
    w1_fused = w1_fused.at[:D_MODEL, :].set(0.0)                   # drop CLS

    b1_p = jnp.pad(b1, (0, pad)).reshape(1, HIDDEN_PAD)
    w2_p = jnp.pad(w2_f, ((0, pad), (0, 0)))                       # (128, 11)
    b2_p = b2_f.reshape(1, CLASS_NUM)
    return (w1_fused.astype(dtype), b1_p.astype(jnp.float32),
            w2_p.astype(jnp.float32), b2_p.astype(jnp.float32))


def init_raw_params(key):
    """Deterministic synthetic parameters in PyTorch shapes."""
    k = jax.random.split(key, 8)
    w1 = jax.random.normal(k[0], (HIDDEN, D_MODEL), jnp.float32) / jnp.sqrt(D_MODEL)
    b1 = 0.01 * jax.random.normal(k[1], (HIDDEN,), jnp.float32)
    w2 = jax.random.normal(k[2], (CLASS_NUM, HIDDEN), jnp.float32) / jnp.sqrt(HIDDEN)
    b2 = 0.01 * jax.random.normal(k[3], (CLASS_NUM,), jnp.float32)
    gamma = 1.0 + 0.1 * jax.random.normal(k[4], (HIDDEN,), jnp.float32)
    beta = 0.1 * jax.random.normal(k[5], (HIDDEN,), jnp.float32)
    rmean = 0.1 * jax.random.normal(k[6], (HIDDEN,), jnp.float32)
    rvar = 1.0 + 0.1 * jax.nn.softplus(jax.random.normal(k[7], (HIDDEN,), jnp.float32))
    return dict(w1=w1, b1=b1, w2=w2, b2=b2,
                gamma=gamma, beta=beta, rmean=rmean, rvar=rvar)


def reference_head(x, raw):
    """Pure-JAX reference of the PyTorch head (eval-mode BN)."""
    pooled = jnp.mean(x[:, 1:, :], axis=1)
    h = pooled @ raw["w1"].T + raw["b1"]
    h = SELU_SCALE * jnp.where(h > 0, h, SELU_ALPHA * (jnp.exp(h) - 1.0))
    h = (h - raw["rmean"]) * jax.lax.rsqrt(raw["rvar"] + BN_EPS)
    h = h * raw["gamma"] + raw["beta"]
    logits = h @ raw["w2"].T + raw["b2"]
    return jax.nn.softmax(logits, axis=-1)


if __name__ == "__main__":
    key = jax.random.PRNGKey(0)
    kx, kp, kx2 = jax.random.split(key, 3)

    S = 9  # 1 CLS token + 8 patch tokens, d_model = 256
    raw = init_raw_params(kp)

    # --- float32 path, tiny batch (single full-extent tile) ---
    B = 2
    x = jax.random.normal(kx, (B, S, D_MODEL), jnp.float32)
    params_f32 = prepare_params(raw, S, jnp.float32)
    out = jax.block_until_ready(trans_downstream_head(x, *params_f32))

    assert out.shape == (B, CLASS_NUM)
    row_sums = jnp.sum(out, axis=-1)
    assert bool(jnp.all(jnp.abs(row_sums - 1.0) < 1e-4))
    assert bool(jnp.all(out >= 0.0))
    ref = reference_head(x, raw)
    assert bool(jnp.max(jnp.abs(out - ref)) < 1e-4)

    # --- bfloat16 input path (halves HBM traffic), ragged multi-tile batch ---
    B2 = 100
    x2 = jax.random.normal(kx2, (B2, S, D_MODEL), jnp.float32)
    params_bf16 = prepare_params(raw, S, jnp.bfloat16)
    out2 = jax.block_until_ready(
        trans_downstream_head(x2.astype(jnp.bfloat16), *params_bf16))

    assert out2.shape == (B2, CLASS_NUM)
    ref2 = reference_head(x2, raw)
    assert bool(jnp.max(jnp.abs(out2.astype(jnp.float32) - ref2)) < 5e-3)

    print("KERNEL_OK")
</pallas_src>

<mosaic_0001>
module attributes {stable_mosaic.version = 11 : i64} {
  func.func @head_kernel(%arg0: i32, %arg1: memref<2x2304xf32, #tpu.memory_space<vmem>>, %arg2: memref<2304x128xf32, #tpu.memory_space<vmem>>, %arg3: memref<1x128xf32, #tpu.memory_space<vmem>>, %arg4: memref<128x11xf32, #tpu.memory_space<vmem>>, %arg5: memref<1x11xf32, #tpu.memory_space<vmem>>, %arg6: memref<2x11xf32, #tpu.memory_space<vmem>>) attributes {dimension_semantics = [#tpu.dimension_semantics<parallel>], iteration_bounds = array<i64: 1>, scalar_prefetch = 0 : i64, scratch_operands = 0 : i64, tpu.core_type = #tpu.core_type<tc>, window_params = [{transform_indices = @transform_0, window_bounds = array<i64: 2, 2304>}, {pipeline_mode = #tpu.pipeline_mode<synchronous>, transform_indices = @transform_1, window_bounds = array<i64: 2304, 128>}, {pipeline_mode = #tpu.pipeline_mode<synchronous>, transform_indices = @transform_2, window_bounds = array<i64: 1, 128>}, {pipeline_mode = #tpu.pipeline_mode<synchronous>, transform_indices = @transform_3, window_bounds = array<i64: 128, 11>}, {pipeline_mode = #tpu.pipeline_mode<synchronous>, transform_indices = @transform_4, window_bounds = array<i64: 1, 11>}, {transform_indices = @transform_5, window_bounds = array<i64: 2, 11>}]} {
    %c0 = arith.constant 0 : index
    %c0_0 = arith.constant 0 : index
    %0 = vector.load %arg1[%c0, %c0_0] : memref<2x2304xf32, #tpu.memory_space<vmem>>, vector<2x2304xf32>
    %c0_1 = arith.constant 0 : index
    %c0_2 = arith.constant 0 : index
    %1 = vector.load %arg2[%c0_1, %c0_2] : memref<2304x128xf32, #tpu.memory_space<vmem>>, vector<2304x128xf32>
    %cst = arith.constant dense<0.000000e+00> : vector<2x128xf32>
    %2 = tpu.matmul %0, %1, %cst {dimension_numbers = #tpu.dot_dimension_numbers<[1], [0], [0], [1], [0, 0, 1, 1], [], []>} : vector<2x2304xf32>, vector<2304x128xf32>, vector<2x128xf32> -> vector<2x128xf32>
    %c0_3 = arith.constant 0 : index
    %c0_4 = arith.constant 0 : index
    %3 = vector.load %arg3[%c0_3, %c0_4] : memref<1x128xf32, #tpu.memory_space<vmem>>, vector<1x128xf32>
    %4 = vector.broadcast %3 : vector<1x128xf32> to vector<2x128xf32>
    %5 = arith.addf %2, %4 : vector<2x128xf32>
    %cst_5 = arith.constant 0.000000e+00 : f32
    %6 = vector.broadcast %cst_5 : f32 to vector<2x128xf32>
    %7 = arith.cmpf ogt, %5, %6 : vector<2x128xf32>
    %cst_6 = arith.constant 0.000000e+00 : f32
    %8 = vector.broadcast %cst_6 : f32 to vector<2x128xf32>
    %9 = arith.minimumf %5, %8 : vector<2x128xf32>
    %10 = math.exp %9 : vector<2x128xf32>
    %cst_7 = arith.constant 1.000000e+00 : f32
    %11 = vector.broadcast %cst_7 : f32 to vector<2x128xf32>
    %12 = arith.subf %10, %11 : vector<2x128xf32>
    %cst_8 = arith.constant 1.67326319 : f32
    %13 = vector.broadcast %cst_8 : f32 to vector<2x128xf32>
    %14 = arith.mulf %13, %12 : vector<2x128xf32>
    %15 = arith.select %7, %5, %14 : vector<2x128xi1>, vector<2x128xf32>
    %cst_9 = arith.constant 1.05070102 : f32
    %16 = vector.broadcast %cst_9 : f32 to vector<2x128xf32>
    %17 = arith.mulf %16, %15 : vector<2x128xf32>
    %c0_10 = arith.constant 0 : index
    %c0_11 = arith.constant 0 : index
    %18 = vector.load %arg4[%c0_10, %c0_11] : memref<128x11xf32, #tpu.memory_space<vmem>>, vector<128x11xf32>
    %cst_12 = arith.constant dense<0.000000e+00> : vector<2x11xf32>
    %19 = tpu.matmul %17, %18, %cst_12 {dimension_numbers = #tpu.dot_dimension_numbers<[1], [0], [0], [1], [0, 0, 1, 1], [], []>} : vector<2x128xf32>, vector<128x11xf32>, vector<2x11xf32> -> vector<2x11xf32>
    %c0_13 = arith.constant 0 : index
    %c0_14 = arith.constant 0 : index
    %20 = vector.load %arg5[%c0_13, %c0_14] : memref<1x11xf32, #tpu.memory_space<vmem>>, vector<1x11xf32>
    %21 = vector.broadcast %20 : vector<1x11xf32> to vector<2x11xf32>
    %22 = arith.addf %19, %21 : vector<2x11xf32>
    %cst_15 = arith.constant dense<0xFF800000> : vector<2xf32>
    %23 = vector.multi_reduction <maximumf>, %22, %cst_15 [1] : vector<2x11xf32> to vector<2xf32>
    %24 = vector.shape_cast %23 : vector<2xf32> to vector<2x1xf32>
    %25 = vector.broadcast %24 : vector<2x1xf32> to vector<2x11xf32>
    %26 = arith.subf %22, %25 : vector<2x11xf32>
    %27 = math.exp %26 : vector<2x11xf32>
    %cst_16 = arith.constant dense<0.000000e+00> : vector<2xf32>
    %28 = vector.multi_reduction <add>, %27, %cst_16 [1] : vector<2x11xf32> to vector<2xf32>
    %29 = vector.shape_cast %28 : vector<2xf32> to vector<2x1xf32>
    %30 = vector.broadcast %29 : vector<2x1xf32> to vector<2x11xf32>
    %31 = arith.divf %27, %30 : vector<2x11xf32>
    %c0_17 = arith.constant 0 : index
    %c0_18 = arith.constant 0 : index
    %32 = vector.load %arg6[%c0_17, %c0_18] : memref<2x11xf32, #tpu.memory_space<vmem>>, vector<2x11xf32>
    tpu.vector_store %arg6[%c0_17, %c0_18], %31 {strides = array<i32>} : memref<2x11xf32, #tpu.memory_space<vmem>>, vector<2x11xf32>,
    return
  }
  func.func @transform_0(%arg0: i32) -> (i32, i32) {
    %c0_i32 = arith.constant 0 : i32
    %c0_i32_0 = arith.constant 0 : i32
    return %arg0, %c0_i32 : i32, i32
  }
  func.func @transform_1(%arg0: i32) -> (i32, i32) {
    %c0_i32 = arith.constant 0 : i32
    %c0_i32_0 = arith.constant 0 : i32
    %c0_i32_1 = arith.constant 0 : i32
    return %c0_i32, %c0_i32_0 : i32, i32
  }
  func.func @transform_2(%arg0: i32) -> (i32, i32) {
    %c0_i32 = arith.constant 0 : i32
    %c0_i32_0 = arith.constant 0 : i32
    %c0_i32_1 = arith.constant 0 : i32
    return %c0_i32, %c0_i32_0 : i32, i32
  }
  func.func @transform_3(%arg0: i32) -> (i32, i32) {
    %c0_i32 = arith.constant 0 : i32
    %c0_i32_0 = arith.constant 0 : i32
    %c0_i32_1 = arith.constant 0 : i32
    return %c0_i32, %c0_i32_0 : i32, i32
  }
  func.func @transform_4(%arg0: i32) -> (i32, i32) {
    %c0_i32 = arith.constant 0 : i32
    %c0_i32_0 = arith.constant 0 : i32
    %c0_i32_1 = arith.constant 0 : i32
    return %c0_i32, %c0_i32_0 : i32, i32
  }
  func.func @transform_5(%arg0: i32) -> (i32, i32) {
    %c0_i32 = arith.constant 0 : i32
    %c0_i32_0 = arith.constant 0 : i32
    return %arg0, %c0_i32 : i32, i32
  }
}

</mosaic_0001>

<llo_original>
// kernel: tpu_custom_call.1
$region0: #{tpu_custom_call.1}
  #allocation0 [shape = 'u32[]', space=smem, size = 0x4, offset = 0x4, fixed_abs, tag = 'smem constant byte address 0x4 - core index']
  #allocation1 [shape = 'u32[72,128]{1,0:T(1,128)}', space=vmem, size = 0x9000, scoped, tag = 'internal scratch']
  %s0 = inlined_call_operand.hbm [shape: f32[2,2304], index: 0, kind: input, shape index: {}]
  %s1 = inlined_call_operand.hbm [shape: f32[2304,128], index: 1, kind: input, shape index: {}]
  %s2 = inlined_call_operand.hbm [shape: f32[1,128], index: 2, kind: input, shape index: {}]
  %s3 = inlined_call_operand.vmem [shape: f32[128,11], index: 3, kind: input, shape index: {}]
  %s4 = inlined_call_operand.hbm [shape: f32[1,11], index: 4, kind: input, shape index: {}]
  %s5 = inlined_call_operand.hbm [shape: f32[2,11], index: 5, kind: output, shape index: {}]
  %s6 = sld [smem:[#allocation0]]
  $region46: #{tpu_custom_call.1} parent=0
    _
  %s8 = ssub.s32 1, %s6
  %s9 = scalar_select 0, %s8, %s6
  $region1: #{tpu_custom_call.1} parent=0
    #allocation2 [shape = 'u8[18432]{0}', space=vmem, size = 0x4800, scoped, tag = 'input window, operand 0, single buffered']
    #allocation3 [shape = 's32[1]{0}', space=sflag, size = 0x4, scoped, tag = 'scoped memory for tpu_custom_call.1']
    #allocation4 [shape = 's32[1]{0}', space=sflag, size = 0x4, scoped, tag = 'scoped memory for tpu_custom_call.1']
    #allocation5 [shape = 'u8[1179648]{0}', space=vmem, size = 0x120000, scoped, tag = 'input window, operand 1, single buffered']
    #allocation6 [shape = 's32[1]{0}', space=sflag, size = 0x4, scoped, tag = 'scoped memory for tpu_custom_call.1']
    #allocation7 [shape = 'u8[512]{0}', space=vmem, size = 0x400, scoped, tag = 'input window, operand 2, single buffered']
    #allocation8 [shape = 'u8[512]{0}', space=vmem, size = 0x400, scoped, tag = 'input window, operand 4, single buffered']
    #allocation9 [shape = 's32[1]{0}', space=sflag, size = 0x4, scoped, tag = 'scoped memory for tpu_custom_call.1']
    #allocation10 [shape = 'u8[1024]{0}', space=vmem, size = 0x400, scoped, tag = 'output window, operand 0, single buffered']
    %10 = vsyncpa [#allocation3], 0
    %11 = vsyncpa [#allocation6], 0
    %12 = vsyncpa [#allocation9], 0
    %13 = vsyncpa [#allocation4], 0
    // Predicated region
    $region2: #{tpu_custom_call.1} parent=1 // pred_check
      _
    $region3: #{tpu_custom_call.1} parent=1 // pred_check_branch
      %15 = sbr.rel (0) target = $region5
    $region4: #{tpu_custom_call.1} parent=1 // pred_region
      %17 = vsyncadd [#allocation3], 0
      %s19 = sshll.u32 %s0, 4
      %s20 = int_to_ptr.hbm [resolvable:$true] %s19
      %s21 = sshll.u32 [#allocation2], 4
      %s22 = int_to_ptr.vmem [resolvable:$true] %s21
      %24 = dma.hbm_to_vmem [thread:$0]  %s20, 576, %s22, [#allocation3]
    $region5: #{tpu_custom_call.1} parent=1 // pred_fallthru
      _
    // Predicated region
    $region6: #{tpu_custom_call.1} parent=1 // pred_check
      _
    $region7: #{tpu_custom_call.1} parent=1 // pred_check_branch
      %26 = sbr.rel (0) target = $region9
    $region8: #{tpu_custom_call.1} parent=1 // pred_region
      %28 = vsyncadd [#allocation6], 0
      %s29 = sshll.u32 %s1, 4
      %s30 = int_to_ptr.hbm [resolvable:$true] %s29
      %s31 = sshll.u32 [#allocation5], 4
      %s32 = int_to_ptr.vmem [resolvable:$true] %s31
      %37 = dma.hbm_to_vmem [thread:$0]  %s30, 36864, %s32, [#allocation6], 128, 128, 8
    $region9: #{tpu_custom_call.1} parent=1 // pred_fallthru
      _
    // Predicated region
    $region10: #{tpu_custom_call.1} parent=1 // pred_check
      _
    $region11: #{tpu_custom_call.1} parent=1 // pred_check_branch
      %39 = sbr.rel (0) target = $region13
    $region12: #{tpu_custom_call.1} parent=1 // pred_region
      %41 = vsyncadd [#allocation6], 0
      %s43 = sshll.u32 %s2, 4
      %s44 = int_to_ptr.hbm [resolvable:$true] %s43
      %s45 = sshll.u32 [#allocation7], 4
      %s46 = int_to_ptr.vmem [resolvable:$true] %s45
      %48 = dma.hbm_to_vmem [thread:$0]  %s44, 16, %s46, [#allocation6]
    $region13: #{tpu_custom_call.1} parent=1 // pred_fallthru
      _
    // Predicated region
    $region14: #{tpu_custom_call.1} parent=1 // pred_check
      _
    $region15: #{tpu_custom_call.1} parent=1 // pred_check_branch
      %50 = sbr.rel (0) target = $region17
    $region16: #{tpu_custom_call.1} parent=1 // pred_region
      _
    $region17: #{tpu_custom_call.1} parent=1 // pred_fallthru
      _
    // Predicated region
    $region18: #{tpu_custom_call.1} parent=1 // pred_check
      _
    $region19: #{tpu_custom_call.1} parent=1 // pred_check_branch
      %52 = sbr.rel (0) target = $region21
    $region20: #{tpu_custom_call.1} parent=1 // pred_region
      %54 = vsyncadd [#allocation9], 0
      %s56 = sshll.u32 %s4, 4
      %s57 = int_to_ptr.hbm [resolvable:$true] %s56
      %s58 = sshll.u32 [#allocation8], 4
      %s59 = int_to_ptr.vmem [resolvable:$true] %s58
      %61 = dma.hbm_to_vmem [thread:$0]  %s57, 16, %s59, [#allocation9]
    $region21: #{tpu_custom_call.1} parent=1 // pred_fallthru
      _
    // Predicated region
    $region22: #{tpu_custom_call.1} parent=1 // pred_check
      _
    $region23: #{tpu_custom_call.1} parent=1 // pred_check_branch
      %63 = sbr.rel (0) target = $region25
    $region24: #{tpu_custom_call.1} parent=1 // pred_region
      %65 = dma.done [#allocation3], 576
    $region25: #{tpu_custom_call.1} parent=1 // pred_fallthru
      _
    // Predicated region
    $region26: #{tpu_custom_call.1} parent=1 // pred_check
      _
    $region27: #{tpu_custom_call.1} parent=1 // pred_check_branch
      %67 = sbr.rel (0) target = $region29
    $region28: #{tpu_custom_call.1} parent=1 // pred_region
      %69 = dma.done [#allocation6], 36864
    $region29: #{tpu_custom_call.1} parent=1 // pred_fallthru
      _
    // Predicated region
    $region30: #{tpu_custom_call.1} parent=1 // pred_check
      _
    $region31: #{tpu_custom_call.1} parent=1 // pred_check_branch
      %71 = sbr.rel (0) target = $region33
    $region32: #{tpu_custom_call.1} parent=1 // pred_region
      %73 = dma.done [#allocation6], 16
    $region33: #{tpu_custom_call.1} parent=1 // pred_fallthru
      _
    // Predicated region
    $region34: #{tpu_custom_call.1} parent=1 // pred_check
      _
    $region35: #{tpu_custom_call.1} parent=1 // pred_check_branch
      %75 = sbr.rel (0) target = $region37
    $region36: #{tpu_custom_call.1} parent=1 // pred_region
      %77 = dma.done [#allocation9], 16
    $region37: #{tpu_custom_call.1} parent=1 // pred_fallthru
      _
    %v78 = vld [vmem:[#allocation2] sm:$0xff]
    %v79 = vld [vmem:[#allocation2 + $0x8] sm:$0xff]
    %v80 = vld [vmem:[#allocation2 + $0x10] sm:$0xff]
    %v81 = vld [vmem:[#allocation2 + $0x18] sm:$0xff]
    %v82 = vld [vmem:[#allocation2 + $0x20] sm:$0xf]
    %v83 = vld [vmem:[#allocation5] sm:$0xff]
    %v84 = vld [vmem:[#allocation5 + $0x8] sm:$0xff]
    %v85 = vld [vmem:[#allocation5 + $0x10] sm:$0xff]
    %v86 = vld [vmem:[#allocation5 + $0x18] sm:$0xff]
    %v87 = vld [vmem:[#allocation5 + $0x20] sm:$0xff]
    %v88 = vld [vmem:[#allocation5 + $0x28] sm:$0xff]
    %v89 = vld [vmem:[#allocation5 + $0x30] sm:$0xff]
    %v90 = vld [vmem:[#allocation5 + $0x38] sm:$0xff]
    %v91 = vld [vmem:[#allocation5 + $0x40] sm:$0xff]
    %v92 = vld [vmem:[#allocation5 + $0x48] sm:$0xff]
    %v93 = vld [vmem:[#allocation5 + $0x50] sm:$0xff]
    %v94 = vld [vmem:[#allocation5 + $0x58] sm:$0xff]
    %v95 = vld [vmem:[#allocation5 + $0x60] sm:$0xff]
    %v96 = vld [vmem:[#allocation5 + $0x68] sm:$0xff]
    %v97 = vld [vmem:[#allocation5 + $0x70] sm:$0xff]
    %v98 = vld [vmem:[#allocation5 + $0x78] sm:$0xff]
    %v99 = vld [vmem:[#allocation5 + $0x80] sm:$0xff]
    %v100 = vld [vmem:[#allocation5 + $0x88] sm:$0xff]
    %v101 = vld [vmem:[#allocation5 + $0x90] sm:$0xff]
    %v102 = vld [vmem:[#allocation5 + $0x98] sm:$0xff]
    %v103 = vld [vmem:[#allocation5 + $0xa0] sm:$0xff]
    %v104 = vld [vmem:[#allocation5 + $0xa8] sm:$0xff]
    %v105 = vld [vmem:[#allocation5 + $0xb0] sm:$0xff]
    %v106 = vld [vmem:[#allocation5 + $0xb8] sm:$0xff]
    %v107 = vld [vmem:[#allocation5 + $0xc0] sm:$0xff]
    %v108 = vld [vmem:[#allocation5 + $0xc8] sm:$0xff]
    %v109 = vld [vmem:[#allocation5 + $0xd0] sm:$0xff]
    %v110 = vld [vmem:[#allocation5 + $0xd8] sm:$0xff]
    %v111 = vld [vmem:[#allocation5 + $0xe0] sm:$0xff]
    %v112 = vld [vmem:[#allocation5 + $0xe8] sm:$0xff]
    %v113 = vld [vmem:[#allocation5 + $0xf0] sm:$0xff]
    %v114 = vld [vmem:[#allocation5 + $0xf8] sm:$0xff]
    %v115 = vld [vmem:[#allocation5 + $0x100] sm:$0xff]
    %v116 = vld [vmem:[#allocation5 + $0x108] sm:$0xff]
    %v117 = vld [vmem:[#allocation5 + $0x110] sm:$0xff]
    %v118 = vld [vmem:[#allocation5 + $0x118] sm:$0xff]
    %v119 = vld [vmem:[#allocation5 + $0x120] sm:$0xff]
    %v120 = vld [vmem:[#allocation5 + $0x128] sm:$0xff]
    %v121 = vld [vmem:[#allocation5 + $0x130] sm:$0xff]
    %v122 = vld [vmem:[#allocation5 + $0x138] sm:$0xff]
    %v123 = vld [vmem:[#allocation5 + $0x140] sm:$0xff]
    %v124 = vld [vmem:[#allocation5 + $0x148] sm:$0xff]
    %v125 = vld [vmem:[#allocation5 + $0x150] sm:$0xff]
    %v126 = vld [vmem:[#allocation5 + $0x158] sm:$0xff]
    %v127 = vld [vmem:[#allocation5 + $0x160] sm:$0xff]
    %v128 = vld [vmem:[#allocation5 + $0x168] sm:$0xff]
    %v129 = vld [vmem:[#allocation5 + $0x170] sm:$0xff]
    %v130 = vld [vmem:[#allocation5 + $0x178] sm:$0xff]
    %v131 = vld [vmem:[#allocation5 + $0x180] sm:$0xff]
    %v132 = vld [vmem:[#allocation5 + $0x188] sm:$0xff]
    %v133 = vld [vmem:[#allocation5 + $0x190] sm:$0xff]
    %v134 = vld [vmem:[#allocation5 + $0x198] sm:$0xff]
    %v135 = vld [vmem:[#allocation5 + $0x1a0] sm:$0xff]
    %v136 = vld [vmem:[#allocation5 + $0x1a8] sm:$0xff]
    %v137 = vld [vmem:[#allocation5 + $0x1b0] sm:$0xff]
    %v138 = vld [vmem:[#allocation5 + $0x1b8] sm:$0xff]
    %v139 = vld [vmem:[#allocation5 + $0x1c0] sm:$0xff]
    %v140 = vld [vmem:[#allocation5 + $0x1c8] sm:$0xff]
    %v141 = vld [vmem:[#allocation5 + $0x1d0] sm:$0xff]
    %v142 = vld [vmem:[#allocation5 + $0x1d8] sm:$0xff]
    %v143 = vld [vmem:[#allocation5 + $0x1e0] sm:$0xff]
    %v144 = vld [vmem:[#allocation5 + $0x1e8] sm:$0xff]
    %v145 = vld [vmem:[#allocation5 + $0x1f0] sm:$0xff]
    %v146 = vld [vmem:[#allocation5 + $0x1f8] sm:$0xff]
    %v147 = vld [vmem:[#allocation5 + $0x200] sm:$0xff]
    %v148 = vld [vmem:[#allocation5 + $0x208] sm:$0xff]
    %v149 = vld [vmem:[#allocation5 + $0x210] sm:$0xff]
    %v150 = vld [vmem:[#allocation5 + $0x218] sm:$0xff]
    %v151 = vld [vmem:[#allocation5 + $0x220] sm:$0xff]
    %v152 = vld [vmem:[#allocation5 + $0x228] sm:$0xff]
    %v153 = vld [vmem:[#allocation5 + $0x230] sm:$0xff]
    %v154 = vld [vmem:[#allocation5 + $0x238] sm:$0xff]
    %v155 = vld [vmem:[#allocation5 + $0x240] sm:$0xff]
    %v156 = vld [vmem:[#allocation5 + $0x248] sm:$0xff]
    %v157 = vld [vmem:[#allocation5 + $0x250] sm:$0xff]
    %v158 = vld [vmem:[#allocation5 + $0x258] sm:$0xff]
    %v159 = vld [vmem:[#allocation5 + $0x260] sm:$0xff]
    %v160 = vld [vmem:[#allocation5 + $0x268] sm:$0xff]
    %v161 = vld [vmem:[#allocation5 + $0x270] sm:$0xff]
    %v162 = vld [vmem:[#allocation5 + $0x278] sm:$0xff]
    %v163 = vld [vmem:[#allocation5 + $0x280] sm:$0xff]
    %v164 = vld [vmem:[#allocation5 + $0x288] sm:$0xff]
    %v165 = vld [vmem:[#allocation5 + $0x290] sm:$0xff]
    %v166 = vld [vmem:[#allocation5 + $0x298] sm:$0xff]
    %v167 = vld [vmem:[#allocation5 + $0x2a0] sm:$0xff]
    %v168 = vld [vmem:[#allocation5 + $0x2a8] sm:$0xff]
    %v169 = vld [vmem:[#allocation5 + $0x2b0] sm:$0xff]
    %v170 = vld [vmem:[#allocation5 + $0x2b8] sm:$0xff]
    %v171 = vld [vmem:[#allocation5 + $0x2c0] sm:$0xff]
    %v172 = vld [vmem:[#allocation5 + $0x2c8] sm:$0xff]
    %v173 = vld [vmem:[#allocation5 + $0x2d0] sm:$0xff]
    %v174 = vld [vmem:[#allocation5 + $0x2d8] sm:$0xff]
    %v175 = vld [vmem:[#allocation5 + $0x2e0] sm:$0xff]
    %v176 = vld [vmem:[#allocation5 + $0x2e8] sm:$0xff]
    %v177 = vld [vmem:[#allocation5 + $0x2f0] sm:$0xff]
    %v178 = vld [vmem:[#allocation5 + $0x2f8] sm:$0xff]
    %v179 = vld [vmem:[#allocation5 + $0x300] sm:$0xff]
    %v180 = vld [vmem:[#allocation5 + $0x308] sm:$0xff]
    %v181 = vld [vmem:[#allocation5 + $0x310] sm:$0xff]
    %v182 = vld [vmem:[#allocation5 + $0x318] sm:$0xff]
    %v183 = vld [vmem:[#allocation5 + $0x320] sm:$0xff]
    %v184 = vld [vmem:[#allocation5 + $0x328] sm:$0xff]
    %v185 = vld [vmem:[#allocation5 + $0x330] sm:$0xff]
    %v186 = vld [vmem:[#allocation5 + $0x338] sm:$0xff]
    %v187 = vld [vmem:[#allocation5 + $0x340] sm:$0xff]
    %v188 = vld [vmem:[#allocation5 + $0x348] sm:$0xff]
    %v189 = vld [vmem:[#allocation5 + $0x350] sm:$0xff]
    %v190 = vld [vmem:[#allocation5 + $0x358] sm:$0xff]
    %v191 = vld [vmem:[#allocation5 + $0x360] sm:$0xff]
    %v192 = vld [vmem:[#allocation5 + $0x368] sm:$0xff]
    %v193 = vld [vmem:[#allocation5 + $0x370] sm:$0xff]
    %v194 = vld [vmem:[#allocation5 + $0x378] sm:$0xff]
    %v195 = vld [vmem:[#allocation5 + $0x380] sm:$0xff]
    %v196 = vld [vmem:[#allocation5 + $0x388] sm:$0xff]
    %v197 = vld [vmem:[#allocation5 + $0x390] sm:$0xff]
    %v198 = vld [vmem:[#allocation5 + $0x398] sm:$0xff]
    %v199 = vld [vmem:[#allocation5 + $0x3a0] sm:$0xff]
    %v200 = vld [vmem:[#allocation5 + $0x3a8] sm:$0xff]
    %v201 = vld [vmem:[#allocation5 + $0x3b0] sm:$0xff]
    %v202 = vld [vmem:[#allocation5 + $0x3b8] sm:$0xff]
    %v203 = vld [vmem:[#allocation5 + $0x3c0] sm:$0xff]
    %v204 = vld [vmem:[#allocation5 + $0x3c8] sm:$0xff]
    %v205 = vld [vmem:[#allocation5 + $0x3d0] sm:$0xff]
    %v206 = vld [vmem:[#allocation5 + $0x3d8] sm:$0xff]
    %v207 = vld [vmem:[#allocation5 + $0x3e0] sm:$0xff]
    %v208 = vld [vmem:[#allocation5 + $0x3e8] sm:$0xff]
    %v209 = vld [vmem:[#allocation5 + $0x3f0] sm:$0xff]
    %v210 = vld [vmem:[#allocation5 + $0x3f8] sm:$0xff]
    %v211 = vld [vmem:[#allocation5 + $0x400] sm:$0xff]
    %v212 = vld [vmem:[#allocation5 + $0x408] sm:$0xff]
    %v213 = vld [vmem:[#allocation5 + $0x410] sm:$0xff]
    %v214 = vld [vmem:[#allocation5 + $0x418] sm:$0xff]
    %v215 = vld [vmem:[#allocation5 + $0x420] sm:$0xff]
    %v216 = vld [vmem:[#allocation5 + $0x428] sm:$0xff]
    %v217 = vld [vmem:[#allocation5 + $0x430] sm:$0xff]
    %v218 = vld [vmem:[#allocation5 + $0x438] sm:$0xff]
    %v219 = vld [vmem:[#allocation5 + $0x440] sm:$0xff]
    %v220 = vld [vmem:[#allocation5 + $0x448] sm:$0xff]
    %v221 = vld [vmem:[#allocation5 + $0x450] sm:$0xff]
    %v222 = vld [vmem:[#allocation5 + $0x458] sm:$0xff]
    %v223 = vld [vmem:[#allocation5 + $0x460] sm:$0xff]
    %v224 = vld [vmem:[#allocation5 + $0x468] sm:$0xff]
    %v225 = vld [vmem:[#allocation5 + $0x470] sm:$0xff]
    %v226 = vld [vmem:[#allocation5 + $0x478] sm:$0xff]
    %v227 = vld [vmem:[#allocation5 + $0x480] sm:$0xff]
    %v228 = vld [vmem:[#allocation5 + $0x488] sm:$0xff]
    %v229 = vld [vmem:[#allocation5 + $0x490] sm:$0xff]
    %v230 = vld [vmem:[#allocation5 + $0x498] sm:$0xff]
    %v231 = vld [vmem:[#allocation5 + $0x4a0] sm:$0xff]
    %v232 = vld [vmem:[#allocation5 + $0x4a8] sm:$0xff]
    %v233 = vld [vmem:[#allocation5 + $0x4b0] sm:$0xff]
    %v234 = vld [vmem:[#allocation5 + $0x4b8] sm:$0xff]
    %v235 = vld [vmem:[#allocation5 + $0x4c0] sm:$0xff]
    %v236 = vld [vmem:[#allocation5 + $0x4c8] sm:$0xff]
    %v237 = vld [vmem:[#allocation5 + $0x4d0] sm:$0xff]
    %v238 = vld [vmem:[#allocation5 + $0x4d8] sm:$0xff]
    %v239 = vld [vmem:[#allocation5 + $0x4e0] sm:$0xff]
    %v240 = vld [vmem:[#allocation5 + $0x4e8] sm:$0xff]
    %v241 = vld [vmem:[#allocation5 + $0x4f0] sm:$0xff]
    %v242 = vld [vmem:[#allocation5 + $0x4f8] sm:$0xff]
    %v243 = vld [vmem:[#allocation5 + $0x500] sm:$0xff]
    %v244 = vld [vmem:[#allocation5 + $0x508] sm:$0xff]
    %v245 = vld [vmem:[#allocation5 + $0x510] sm:$0xff]
    %v246 = vld [vmem:[#allocation5 + $0x518] sm:$0xff]
    %v247 = vld [vmem:[#allocation5 + $0x520] sm:$0xff]
    %v248 = vld [vmem:[#allocation5 + $0x528] sm:$0xff]
    %v249 = vld [vmem:[#allocation5 + $0x530] sm:$0xff]
    %v250 = vld [vmem:[#allocation5 + $0x538] sm:$0xff]
    %v251 = vld [vmem:[#allocation5 + $0x540] sm:$0xff]
    %v252 = vld [vmem:[#allocation5 + $0x548] sm:$0xff]
    %v253 = vld [vmem:[#allocation5 + $0x550] sm:$0xff]
    %v254 = vld [vmem:[#allocation5 + $0x558] sm:$0xff]
    %v255 = vld [vmem:[#allocation5 + $0x560] sm:$0xff]
    %v256 = vld [vmem:[#allocation5 + $0x568] sm:$0xff]
    %v257 = vld [vmem:[#allocation5 + $0x570] sm:$0xff]
    %v258 = vld [vmem:[#allocation5 + $0x578] sm:$0xff]
    %v259 = vld [vmem:[#allocation5 + $0x580] sm:$0xff]
    %v260 = vld [vmem:[#allocation5 + $0x588] sm:$0xff]
    %v261 = vld [vmem:[#allocation5 + $0x590] sm:$0xff]
    %v262 = vld [vmem:[#allocation5 + $0x598] sm:$0xff]
    %v263 = vld [vmem:[#allocation5 + $0x5a0] sm:$0xff]
    %v264 = vld [vmem:[#allocation5 + $0x5a8] sm:$0xff]
    %v265 = vld [vmem:[#allocation5 + $0x5b0] sm:$0xff]
    %v266 = vld [vmem:[#allocation5 + $0x5b8] sm:$0xff]
    %v267 = vld [vmem:[#allocation5 + $0x5c0] sm:$0xff]
    %v268 = vld [vmem:[#allocation5 + $0x5c8] sm:$0xff]
    %v269 = vld [vmem:[#allocation5 + $0x5d0] sm:$0xff]
    %v270 = vld [vmem:[#allocation5 + $0x5d8] sm:$0xff]
    %v271 = vld [vmem:[#allocation5 + $0x5e0] sm:$0xff]
    %v272 = vld [vmem:[#allocation5 + $0x5e8] sm:$0xff]
    %v273 = vld [vmem:[#allocation5 + $0x5f0] sm:$0xff]
    %v274 = vld [vmem:[#allocation5 + $0x5f8] sm:$0xff]
    %v275 = vld [vmem:[#allocation5 + $0x600] sm:$0xff]
    %v276 = vld [vmem:[#allocation5 + $0x608] sm:$0xff]
    %v277 = vld [vmem:[#allocation5 + $0x610] sm:$0xff]
    %v278 = vld [vmem:[#allocation5 + $0x618] sm:$0xff]
    %v279 = vld [vmem:[#allocation5 + $0x620] sm:$0xff]
    %v280 = vld [vmem:[#allocation5 + $0x628] sm:$0xff]
    %v281 = vld [vmem:[#allocation5 + $0x630] sm:$0xff]
    %v282 = vld [vmem:[#allocation5 + $0x638] sm:$0xff]
    %v283 = vld [vmem:[#allocation5 + $0x640] sm:$0xff]
    %v284 = vld [vmem:[#allocation5 + $0x648] sm:$0xff]
    %v285 = vld [vmem:[#allocation5 + $0x650] sm:$0xff]
    %v286 = vld [vmem:[#allocation5 + $0x658] sm:$0xff]
    %v287 = vld [vmem:[#allocation5 + $0x660] sm:$0xff]
    %v288 = vld [vmem:[#allocation5 + $0x668] sm:$0xff]
    %v289 = vld [vmem:[#allocation5 + $0x670] sm:$0xff]
    %v290 = vld [vmem:[#allocation5 + $0x678] sm:$0xff]
    %v291 = vld [vmem:[#allocation5 + $0x680] sm:$0xff]
    %v292 = vld [vmem:[#allocation5 + $0x688] sm:$0xff]
    %v293 = vld [vmem:[#allocation5 + $0x690] sm:$0xff]
    %v294 = vld [vmem:[#allocation5 + $0x698] sm:$0xff]
    %v295 = vld [vmem:[#allocation5 + $0x6a0] sm:$0xff]
    %v296 = vld [vmem:[#allocation5 + $0x6a8] sm:$0xff]
    %v297 = vld [vmem:[#allocation5 + $0x6b0] sm:$0xff]
    %v298 = vld [vmem:[#allocation5 + $0x6b8] sm:$0xff]
    %v299 = vld [vmem:[#allocation5 + $0x6c0] sm:$0xff]
    %v300 = vld [vmem:[#allocation5 + $0x6c8] sm:$0xff]
    %v301 = vld [vmem:[#allocation5 + $0x6d0] sm:$0xff]
    %v302 = vld [vmem:[#allocation5 + $0x6d8] sm:$0xff]
    %v303 = vld [vmem:[#allocation5 + $0x6e0] sm:$0xff]
    %v304 = vld [vmem:[#allocation5 + $0x6e8] sm:$0xff]
    %v305 = vld [vmem:[#allocation5 + $0x6f0] sm:$0xff]
    %v306 = vld [vmem:[#allocation5 + $0x6f8] sm:$0xff]
    %v307 = vld [vmem:[#allocation5 + $0x700] sm:$0xff]
    %v308 = vld [vmem:[#allocation5 + $0x708] sm:$0xff]
    %v309 = vld [vmem:[#allocation5 + $0x710] sm:$0xff]
    %v310 = vld [vmem:[#allocation5 + $0x718] sm:$0xff]
    %v311 = vld [vmem:[#allocation5 + $0x720] sm:$0xff]
    %v312 = vld [vmem:[#allocation5 + $0x728] sm:$0xff]
    %v313 = vld [vmem:[#allocation5 + $0x730] sm:$0xff]
    %v314 = vld [vmem:[#allocation5 + $0x738] sm:$0xff]
    %v315 = vld [vmem:[#allocation5 + $0x740] sm:$0xff]
    %v316 = vld [vmem:[#allocation5 + $0x748] sm:$0xff]
    %v317 = vld [vmem:[#allocation5 + $0x750] sm:$0xff]
    %v318 = vld [vmem:[#allocation5 + $0x758] sm:$0xff]
    %v319 = vld [vmem:[#allocation5 + $0x760] sm:$0xff]
    %v320 = vld [vmem:[#allocation5 + $0x768] sm:$0xff]
    %v321 = vld [vmem:[#allocation5 + $0x770] sm:$0xff]
    %v322 = vld [vmem:[#allocation5 + $0x778] sm:$0xff]
    %v323 = vld [vmem:[#allocation5 + $0x780] sm:$0xff]
    %v324 = vld [vmem:[#allocation5 + $0x788] sm:$0xff]
    %v325 = vld [vmem:[#allocation5 + $0x790] sm:$0xff]
    %v326 = vld [vmem:[#allocation5 + $0x798] sm:$0xff]
    %v327 = vld [vmem:[#allocation5 + $0x7a0] sm:$0xff]
    %v328 = vld [vmem:[#allocation5 + $0x7a8] sm:$0xff]
    %v329 = vld [vmem:[#allocation5 + $0x7b0] sm:$0xff]
    %v330 = vld [vmem:[#allocation5 + $0x7b8] sm:$0xff]
    %v331 = vld [vmem:[#allocation5 + $0x7c0] sm:$0xff]
    %v332 = vld [vmem:[#allocation5 + $0x7c8] sm:$0xff]
    %v333 = vld [vmem:[#allocation5 + $0x7d0] sm:$0xff]
    %v334 = vld [vmem:[#allocation5 + $0x7d8] sm:$0xff]
    %v335 = vld [vmem:[#allocation5 + $0x7e0] sm:$0xff]
    %v336 = vld [vmem:[#allocation5 + $0x7e8] sm:$0xff]
    %v337 = vld [vmem:[#allocation5 + $0x7f0] sm:$0xff]
    %v338 = vld [vmem:[#allocation5 + $0x7f8] sm:$0xff]
    %v339 = vld [vmem:[#allocation5 + $0x800] sm:$0xff]
    %v340 = vld [vmem:[#allocation5 + $0x808] sm:$0xff]
    %v341 = vld [vmem:[#allocation5 + $0x810] sm:$0xff]
    %v342 = vld [vmem:[#allocation5 + $0x818] sm:$0xff]
    %v343 = vld [vmem:[#allocation5 + $0x820] sm:$0xff]
    %v344 = vld [vmem:[#allocation5 + $0x828] sm:$0xff]
    %v345 = vld [vmem:[#allocation5 + $0x830] sm:$0xff]
    %v346 = vld [vmem:[#allocation5 + $0x838] sm:$0xff]
    %v347 = vld [vmem:[#allocation5 + $0x840] sm:$0xff]
    %v348 = vld [vmem:[#allocation5 + $0x848] sm:$0xff]
    %v349 = vld [vmem:[#allocation5 + $0x850] sm:$0xff]
    %v350 = vld [vmem:[#allocation5 + $0x858] sm:$0xff]
    %v351 = vld [vmem:[#allocation5 + $0x860] sm:$0xff]
    %v352 = vld [vmem:[#allocation5 + $0x868] sm:$0xff]
    %v353 = vld [vmem:[#allocation5 + $0x870] sm:$0xff]
    %v354 = vld [vmem:[#allocation5 + $0x878] sm:$0xff]
    %v355 = vld [vmem:[#allocation5 + $0x880] sm:$0xff]
    %v356 = vld [vmem:[#allocation5 + $0x888] sm:$0xff]
    %v357 = vld [vmem:[#allocation5 + $0x890] sm:$0xff]
    %v358 = vld [vmem:[#allocation5 + $0x898] sm:$0xff]
    %v359 = vld [vmem:[#allocation5 + $0x8a0] sm:$0xff]
    %v360 = vld [vmem:[#allocation5 + $0x8a8] sm:$0xff]
    %v361 = vld [vmem:[#allocation5 + $0x8b0] sm:$0xff]
    %v362 = vld [vmem:[#allocation5 + $0x8b8] sm:$0xff]
    %v363 = vld [vmem:[#allocation5 + $0x8c0] sm:$0xff]
    %v364 = vld [vmem:[#allocation5 + $0x8c8] sm:$0xff]
    %v365 = vld [vmem:[#allocation5 + $0x8d0] sm:$0xff]
    %v366 = vld [vmem:[#allocation5 + $0x8d8] sm:$0xff]
    %v367 = vld [vmem:[#allocation5 + $0x8e0] sm:$0xff]
    %v368 = vld [vmem:[#allocation5 + $0x8e8] sm:$0xff]
    %v369 = vld [vmem:[#allocation5 + $0x8f0] sm:$0xff]
    %v370 = vld [vmem:[#allocation5 + $0x8f8] sm:$0xff]
    %v371 = vld [vmem:[#allocation7] sm:$0x1]
    %v373 = vperm.slane %v371, 0
    %380 = vst [vmem:[#allocation1] ss:$4 sm:$0xff] %v78
    %s381 = scalar_lea.vmem [#allocation1], 32
    %382 = vst [vmem:[%s381] ss:$4 sm:$0xff] %v79
    %v383 = vld.sshfl [vmem:[#allocation1] sm:$0xff pattern:$0x73625140]
    %v384 = vld.sshfl [vmem:[#allocation1 + $0x8] sm:$0xff pattern:$0x73625140]
    %v385 = vld.sshfl [vmem:[#allocation1 + $0x10] sm:$0xff pattern:$0x73625140]
    %v386 = vld.sshfl [vmem:[#allocation1 + $0x18] sm:$0xff pattern:$0x73625140]
    %v387 = vld.sshfl [vmem:[#allocation1 + $0x20] sm:$0xff pattern:$0x73625140]
    %v388 = vld.sshfl [vmem:[#allocation1 + $0x28] sm:$0xff pattern:$0x73625140]
    %v389 = vld.sshfl [vmem:[#allocation1 + $0x30] sm:$0xff pattern:$0x73625140]
    %v390 = vld.sshfl [vmem:[#allocation1 + $0x38] sm:$0xff pattern:$0x73625140]
    %391 = vst [vmem:[#allocation1] ss:$4 sm:$0xff] %v80
    %392 = vst [vmem:[%s381] ss:$4 sm:$0xff] %v81
    %v393 = vld.sshfl [vmem:[#allocation1] sm:$0xff pattern:$0x73625140]
    %v394 = vld.sshfl [vmem:[#allocation1 + $0x8] sm:$0xff pattern:$0x73625140]
    %v395 = vld.sshfl [vmem:[#allocation1 + $0x10] sm:$0xff pattern:$0x73625140]
    %v396 = vld.sshfl [vmem:[#allocation1 + $0x18] sm:$0xff pattern:$0x73625140]
    %v397 = vld.sshfl [vmem:[#allocation1 + $0x20] sm:$0xff pattern:$0x73625140]
    %v398 = vld.sshfl [vmem:[#allocation1 + $0x28] sm:$0xff pattern:$0x73625140]
    %v399 = vld.sshfl [vmem:[#allocation1 + $0x30] sm:$0xff pattern:$0x73625140]
    %v400 = vld.sshfl [vmem:[#allocation1 + $0x38] sm:$0xff pattern:$0x73625140]
    %401 = vst [vmem:[#allocation1] ss:$4 sm:$0xff] %v82
    %v402 = vld.sshfl [vmem:[#allocation1] sm:$0xff pattern:$0x73625140]
    %v403 = vld.sshfl [vmem:[#allocation1 + $0x8] sm:$0xff pattern:$0x73625140]
    %422 = vmatpush.msra.mxu0 %v98
    %423 = vmatpush.msra.mxu0 %v97
    %424 = vmatpush.msra.mxu0 %v96
    %425 = vmatpush.msra.mxu0 %v95
    %426 = vmatpush.msra.mxu0 %v94
    %427 = vmatpush.msra.mxu0 %v93
    %428 = vmatpush.msra.mxu0 %v92
    %429 = vmatpush.msra.mxu0 %v91
    %430 = vmatpush.msra.mxu0 %v90
    %431 = vmatpush.msra.mxu0 %v89
    %432 = vmatpush.msra.mxu0 %v88
    %433 = vmatpush.msra.mxu0 %v87
    %434 = vmatpush.msra.mxu0 %v86
    %435 = vmatpush.msra.mxu0 %v85
    %436 = vmatpush.msra.mxu0 %v84
    %437 = vmatpush.msra.mxu0 %v83
    %438 = vmatmul.f32.gmra.mxu0 %v383
    %v439 = vpop.f32.mrf.mxu0
    %v440 = vadd.f32 %v373, %v439
    %441 = vdwg.mxu0
    %442 = vmatpush.msra.mxu0 %v114
    %443 = vmatpush.msra.mxu0 %v113
    %444 = vmatpush.msra.mxu0 %v112
    %445 = vmatpush.msra.mxu0 %v111
    %446 = vmatpush.msra.mxu0 %v110
    %447 = vmatpush.msra.mxu0 %v109
    %448 = vmatpush.msra.mxu0 %v108
    %449 = vmatpush.msra.mxu0 %v107
    %450 = vmatpush.msra.mxu0 %v106
    %451 = vmatpush.msra.mxu0 %v105
    %452 = vmatpush.msra.mxu0 %v104
    %453 = vmatpush.msra.mxu0 %v103
    %454 = vmatpush.msra.mxu0 %v102
    %455 = vmatpush.msra.mxu0 %v101
    %456 = vmatpush.msra.mxu0 %v100
    %457 = vmatpush.msra.mxu0 %v99
    %458 = vmatmul.f32.gmra.mxu0 %v384
    %v459 = vpop.f32.mrf.mxu0
    %v460 = vadd.f32 %v440, %v459
    %461 = vdwg.mxu0
    %462 = vmatpush.msra.mxu0 %v130
    %463 = vmatpush.msra.mxu0 %v129
    %464 = vmatpush.msra.mxu0 %v128
    %465 = vmatpush.msra.mxu0 %v127
    %466 = vmatpush.msra.mxu0 %v126
    %467 = vmatpush.msra.mxu0 %v125
    %468 = vmatpush.msra.mxu0 %v124
    %469 = vmatpush.msra.mxu0 %v123
    %470 = vmatpush.msra.mxu0 %v122
    %471 = vmatpush.msra.mxu0 %v121
    %472 = vmatpush.msra.mxu0 %v120
    %473 = vmatpush.msra.mxu0 %v119
    %474 = vmatpush.msra.mxu0 %v118
    %475 = vmatpush.msra.mxu0 %v117
    %476 = vmatpush.msra.mxu0 %v116
    %477 = vmatpush.msra.mxu0 %v115
    %478 = vmatmul.f32.gmra.mxu0 %v385
    %v479 = vpop.f32.mrf.mxu0
    %v480 = vadd.f32 %v460, %v479
    %481 = vdwg.mxu0
    %482 = vmatpush.msra.mxu0 %v146
    %483 = vmatpush.msra.mxu0 %v145
    %484 = vmatpush.msra.mxu0 %v144
    %485 = vmatpush.msra.mxu0 %v143
    %486 = vmatpush.msra.mxu0 %v142
    %487 = vmatpush.msra.mxu0 %v141
    %488 = vmatpush.msra.mxu0 %v140
    %489 = vmatpush.msra.mxu0 %v139
    %490 = vmatpush.msra.mxu0 %v138
    %491 = vmatpush.msra.mxu0 %v137
    %492 = vmatpush.msra.mxu0 %v136
    %493 = vmatpush.msra.mxu0 %v135
    %494 = vmatpush.msra.mxu0 %v134
    %495 = vmatpush.msra.mxu0 %v133
    %496 = vmatpush.msra.mxu0 %v132
    %497 = vmatpush.msra.mxu0 %v131
    %498 = vmatmul.f32.gmra.mxu0 %v386
    %v499 = vpop.f32.mrf.mxu0
    %v500 = vadd.f32 %v480, %v499
    %501 = vdwg.mxu0
    %502 = vmatpush.msra.mxu0 %v162
    %503 = vmatpush.msra.mxu0 %v161
    %504 = vmatpush.msra.mxu0 %v160
    %505 = vmatpush.msra.mxu0 %v159
    %506 = vmatpush.msra.mxu0 %v158
    %507 = vmatpush.msra.mxu0 %v157
    %508 = vmatpush.msra.mxu0 %v156
    %509 = vmatpush.msra.mxu0 %v155
    %510 = vmatpush.msra.mxu0 %v154
    %511 = vmatpush.msra.mxu0 %v153
    %512 = vmatpush.msra.mxu0 %v152
    %513 = vmatpush.msra.mxu0 %v151
    %514 = vmatpush.msra.mxu0 %v150
    %515 = vmatpush.msra.mxu0 %v149
    %516 = vmatpush.msra.mxu0 %v148
    %517 = vmatpush.msra.mxu0 %v147
    %518 = vmatmul.f32.gmra.mxu0 %v387
    %v519 = vpop.f32.mrf.mxu0
    %v520 = vadd.f32 %v500, %v519
    %521 = vdwg.mxu0
    %522 = vmatpush.msra.mxu0 %v178
    %523 = vmatpush.msra.mxu0 %v177
    %524 = vmatpush.msra.mxu0 %v176
    %525 = vmatpush.msra.mxu0 %v175
    %526 = vmatpush.msra.mxu0 %v174
    %527 = vmatpush.msra.mxu0 %v173
    %528 = vmatpush.msra.mxu0 %v172
    %529 = vmatpush.msra.mxu0 %v171
    %530 = vmatpush.msra.mxu0 %v170
    %531 = vmatpush.msra.mxu0 %v169
    %532 = vmatpush.msra.mxu0 %v168
    %533 = vmatpush.msra.mxu0 %v167
    %534 = vmatpush.msra.mxu0 %v166
    %535 = vmatpush.msra.mxu0 %v165
    %536 = vmatpush.msra.mxu0 %v164
    %537 = vmatpush.msra.mxu0 %v163
    %538 = vmatmul.f32.gmra.mxu0 %v388
    %v539 = vpop.f32.mrf.mxu0
    %v540 = vadd.f32 %v520, %v539
    %541 = vdwg.mxu0
    %542 = vmatpush.msra.mxu0 %v194
    %543 = vmatpush.msra.mxu0 %v193
    %544 = vmatpush.msra.mxu0 %v192
    %545 = vmatpush.msra.mxu0 %v191
    %546 = vmatpush.msra.mxu0 %v190
    %547 = vmatpush.msra.mxu0 %v189
    %548 = vmatpush.msra.mxu0 %v188
    %549 = vmatpush.msra.mxu0 %v187
    %550 = vmatpush.msra.mxu0 %v186
    %551 = vmatpush.msra.mxu0 %v185
    %552 = vmatpush.msra.mxu0 %v184
    %553 = vmatpush.msra.mxu0 %v183
    %554 = vmatpush.msra.mxu0 %v182
    %555 = vmatpush.msra.mxu0 %v181
    %556 = vmatpush.msra.mxu0 %v180
    %557 = vmatpush.msra.mxu0 %v179
    %558 = vmatmul.f32.gmra.mxu0 %v389
    %v559 = vpop.f32.mrf.mxu0
    %v560 = vadd.f32 %v540, %v559
    %561 = vdwg.mxu0
    %562 = vmatpush.msra.mxu0 %v210
    %563 = vmatpush.msra.mxu0 %v209
    %564 = vmatpush.msra.mxu0 %v208
    %565 = vmatpush.msra.mxu0 %v207
    %566 = vmatpush.msra.mxu0 %v206
    %567 = vmatpush.msra.mxu0 %v205
    %568 = vmatpush.msra.mxu0 %v204
    %569 = vmatpush.msra.mxu0 %v203
    %570 = vmatpush.msra.mxu0 %v202
    %571 = vmatpush.msra.mxu0 %v201
    %572 = vmatpush.msra.mxu0 %v200
    %573 = vmatpush.msra.mxu0 %v199
    %574 = vmatpush.msra.mxu0 %v198
    %575 = vmatpush.msra.mxu0 %v197
    %576 = vmatpush.msra.mxu0 %v196
    %577 = vmatpush.msra.mxu0 %v195
    %578 = vmatmul.f32.gmra.mxu0 %v390
    %v579 = vpop.f32.mrf.mxu0
    %v580 = vadd.f32 %v560, %v579
    %581 = vdwg.mxu0
    %582 = vmatpush.msra.mxu0 %v226
    %583 = vmatpush.msra.mxu0 %v225
    %584 = vmatpush.msra.mxu0 %v224
    %585 = vmatpush.msra.mxu0 %v223
    %586 = vmatpush.msra.mxu0 %v222
    %587 = vmatpush.msra.mxu0 %v221
    %588 = vmatpush.msra.mxu0 %v220
    %589 = vmatpush.msra.mxu0 %v219
    %590 = vmatpush.msra.mxu0 %v218
    %591 = vmatpush.msra.mxu0 %v217
    %592 = vmatpush.msra.mxu0 %v216
    %593 = vmatpush.msra.mxu0 %v215
    %594 = vmatpush.msra.mxu0 %v214
    %595 = vmatpush.msra.mxu0 %v213
    %596 = vmatpush.msra.mxu0 %v212
    %597 = vmatpush.msra.mxu0 %v211
    %598 = vmatmul.f32.gmra.mxu0 %v393
    %v599 = vpop.f32.mrf.mxu0
    %v600 = vadd.f32 %v580, %v599
    %601 = vdwg.mxu0
    %602 = vmatpush.msra.mxu0 %v242
    %603 = vmatpush.msra.mxu0 %v241
    %604 = vmatpush.msra.mxu0 %v240
    %605 = vmatpush.msra.mxu0 %v239
    %606 = vmatpush.msra.mxu0 %v238
    %607 = vmatpush.msra.mxu0 %v237
    %608 = vmatpush.msra.mxu0 %v236
    %609 = vmatpush.msra.mxu0 %v235
    %610 = vmatpush.msra.mxu0 %v234
    %611 = vmatpush.msra.mxu0 %v233
    %612 = vmatpush.msra.mxu0 %v232
    %613 = vmatpush.msra.mxu0 %v231
    %614 = vmatpush.msra.mxu0 %v230
    %615 = vmatpush.msra.mxu0 %v229
    %616 = vmatpush.msra.mxu0 %v228
    %617 = vmatpush.msra.mxu0 %v227
    %618 = vmatmul.f32.gmra.mxu0 %v394
    %v619 = vpop.f32.mrf.mxu0
    %v620 = vadd.f32 %v600, %v619
    %621 = vdwg.mxu0
    %622 = vmatpush.msra.mxu0 %v258
    %623 = vmatpush.msra.mxu0 %v257
    %624 = vmatpush.msra.mxu0 %v256
    %625 = vmatpush.msra.mxu0 %v255
    %626 = vmatpush.msra.mxu0 %v254
    %627 = vmatpush.msra.mxu0 %v253
    %628 = vmatpush.msra.mxu0 %v252
    %629 = vmatpush.msra.mxu0 %v251
    %630 = vmatpush.msra.mxu0 %v250
    %631 = vmatpush.msra.mxu0 %v249
    %632 = vmatpush.msra.mxu0 %v248
    %633 = vmatpush.msra.mxu0 %v247
    %634 = vmatpush.msra.mxu0 %v246
    %635 = vmatpush.msra.mxu0 %v245
    %636 = vmatpush.msra.mxu0 %v244
    %637 = vmatpush.msra.mxu0 %v243
    %638 = vmatmul.f32.gmra.mxu0 %v395
    %v639 = vpop.f32.mrf.mxu0
    %v640 = vadd.f32 %v620, %v639
    %641 = vdwg.mxu0
    %642 = vmatpush.msra.mxu0 %v274
    %643 = vmatpush.msra.mxu0 %v273
    %644 = vmatpush.msra.mxu0 %v272
    %645 = vmatpush.msra.mxu0 %v271
    %646 = vmatpush.msra.mxu0 %v270
    %647 = vmatpush.msra.mxu0 %v269
    %648 = vmatpush.msra.mxu0 %v268
    %649 = vmatpush.msra.mxu0 %v267
    %650 = vmatpush.msra.mxu0 %v266
    %651 = vmatpush.msra.mxu0 %v265
    %652 = vmatpush.msra.mxu0 %v264
    %653 = vmatpush.msra.mxu0 %v263
    %654 = vmatpush.msra.mxu0 %v262
    %655 = vmatpush.msra.mxu0 %v261
    %656 = vmatpush.msra.mxu0 %v260
    %657 = vmatpush.msra.mxu0 %v259
    %658 = vmatmul.f32.gmra.mxu0 %v396
    %v659 = vpop.f32.mrf.mxu0
    %v660 = vadd.f32 %v640, %v659
    %661 = vdwg.mxu0
    %662 = vmatpush.msra.mxu0 %v290
    %663 = vmatpush.msra.mxu0 %v289
    %664 = vmatpush.msra.mxu0 %v288
    %665 = vmatpush.msra.mxu0 %v287
    %666 = vmatpush.msra.mxu0 %v286
    %667 = vmatpush.msra.mxu0 %v285
    %668 = vmatpush.msra.mxu0 %v284
    %669 = vmatpush.msra.mxu0 %v283
    %670 = vmatpush.msra.mxu0 %v282
    %671 = vmatpush.msra.mxu0 %v281
    %672 = vmatpush.msra.mxu0 %v280
    %673 = vmatpush.msra.mxu0 %v279
    %674 = vmatpush.msra.mxu0 %v278
    %675 = vmatpush.msra.mxu0 %v277
    %676 = vmatpush.msra.mxu0 %v276
    %677 = vmatpush.msra.mxu0 %v275
    %678 = vmatmul.f32.gmra.mxu0 %v397
    %v679 = vpop.f32.mrf.mxu0
    %v680 = vadd.f32 %v660, %v679
    %681 = vdwg.mxu0
    %682 = vmatpush.msra.mxu0 %v306
    %683 = vmatpush.msra.mxu0 %v305
    %684 = vmatpush.msra.mxu0 %v304
    %685 = vmatpush.msra.mxu0 %v303
    %686 = vmatpush.msra.mxu0 %v302
    %687 = vmatpush.msra.mxu0 %v301
    %688 = vmatpush.msra.mxu0 %v300
    %689 = vmatpush.msra.mxu0 %v299
    %690 = vmatpush.msra.mxu0 %v298
    %691 = vmatpush.msra.mxu0 %v297
    %692 = vmatpush.msra.mxu0 %v296
    %693 = vmatpush.msra.mxu0 %v295
    %694 = vmatpush.msra.mxu0 %v294
    %695 = vmatpush.msra.mxu0 %v293
    %696 = vmatpush.msra.mxu0 %v292
    %697 = vmatpush.msra.mxu0 %v291
    %698 = vmatmul.f32.gmra.mxu0 %v398
    %v699 = vpop.f32.mrf.mxu0
    %v700 = vadd.f32 %v680, %v699
    %701 = vdwg.mxu0
    %702 = vmatpush.msra.mxu0 %v322
    %703 = vmatpush.msra.mxu0 %v321
    %704 = vmatpush.msra.mxu0 %v320
    %705 = vmatpush.msra.mxu0 %v319
    %706 = vmatpush.msra.mxu0 %v318
    %707 = vmatpush.msra.mxu0 %v317
    %708 = vmatpush.msra.mxu0 %v316
    %709 = vmatpush.msra.mxu0 %v315
    %710 = vmatpush.msra.mxu0 %v314
    %711 = vmatpush.msra.mxu0 %v313
    %712 = vmatpush.msra.mxu0 %v312
    %713 = vmatpush.msra.mxu0 %v311
    %714 = vmatpush.msra.mxu0 %v310
    %715 = vmatpush.msra.mxu0 %v309
    %716 = vmatpush.msra.mxu0 %v308
    %717 = vmatpush.msra.mxu0 %v307
    %718 = vmatmul.f32.gmra.mxu0 %v399
    %v719 = vpop.f32.mrf.mxu0
    %v720 = vadd.f32 %v700, %v719
    %721 = vdwg.mxu0
    %722 = vmatpush.msra.mxu0 %v338
    %723 = vmatpush.msra.mxu0 %v337
    %724 = vmatpush.msra.mxu0 %v336
    %725 = vmatpush.msra.mxu0 %v335
    %726 = vmatpush.msra.mxu0 %v334
    %727 = vmatpush.msra.mxu0 %v333
    %728 = vmatpush.msra.mxu0 %v332
    %729 = vmatpush.msra.mxu0 %v331
    %730 = vmatpush.msra.mxu0 %v330
    %731 = vmatpush.msra.mxu0 %v329
    %732 = vmatpush.msra.mxu0 %v328
    %733 = vmatpush.msra.mxu0 %v327
    %734 = vmatpush.msra.mxu0 %v326
    %735 = vmatpush.msra.mxu0 %v325
    %736 = vmatpush.msra.mxu0 %v324
    %737 = vmatpush.msra.mxu0 %v323
    %738 = vmatmul.f32.gmra.mxu0 %v400
    %v739 = vpop.f32.mrf.mxu0
    %v740 = vadd.f32 %v720, %v739
    %741 = vdwg.mxu0
    %742 = vmatpush.msra.mxu0 %v354
    %743 = vmatpush.msra.mxu0 %v353
    %744 = vmatpush.msra.mxu0 %v352
    %745 = vmatpush.msra.mxu0 %v351
    %746 = vmatpush.msra.mxu0 %v350
    %747 = vmatpush.msra.mxu0 %v349
    %748 = vmatpush.msra.mxu0 %v348
    %749 = vmatpush.msra.mxu0 %v347
    %750 = vmatpush.msra.mxu0 %v346
    %751 = vmatpush.msra.mxu0 %v345
    %752 = vmatpush.msra.mxu0 %v344
    %753 = vmatpush.msra.mxu0 %v343
    %754 = vmatpush.msra.mxu0 %v342
    %755 = vmatpush.msra.mxu0 %v341
    %756 = vmatpush.msra.mxu0 %v340
    %757 = vmatpush.msra.mxu0 %v339
    %758 = vmatmul.f32.gmra.mxu0 %v402
    %v759 = vpop.f32.mrf.mxu0
    %v760 = vadd.f32 %v740, %v759
    %761 = vdwg.mxu0
    %762 = vmatpush.msra.mxu0 %v370
    %763 = vmatpush.msra.mxu0 %v369
    %764 = vmatpush.msra.mxu0 %v368
    %765 = vmatpush.msra.mxu0 %v367
    %766 = vmatpush.msra.mxu0 %v366
    %767 = vmatpush.msra.mxu0 %v365
    %768 = vmatpush.msra.mxu0 %v364
    %769 = vmatpush.msra.mxu0 %v363
    %770 = vmatpush.msra.mxu0 %v362
    %771 = vmatpush.msra.mxu0 %v361
    %772 = vmatpush.msra.mxu0 %v360
    %773 = vmatpush.msra.mxu0 %v359
    %774 = vmatpush.msra.mxu0 %v358
    %775 = vmatpush.msra.mxu0 %v357
    %776 = vmatpush.msra.mxu0 %v356
    %777 = vmatpush.msra.mxu0 %v355
    %778 = vmatmul.f32.gmra.mxu0 %v403
    %v779 = vpop.f32.mrf.mxu0
    %v780 = vadd.f32 %v760, %v779
    %781 = vdwg.mxu0
    %vm782 = vcmp.gt.f32.partialorder %v780, 0.0
    %v783 = vmin.f32 %v780, 0.0
    %v784 = vmul.f32 %v783, 1.442695
    %v785 = vpow.pop %v784
    %v786 = vsub.f32 %v785, 1.0
    %v787 = vmul.f32 %v786, 1.6732632
    %v788 = vsel %vm782, %v780, %v787
    %v789 = vmul.f32 %v788, 1.050701
    %v790 = vld [vmem:[%s3] sm:$0xff]
    %v791 = vld [vmem:[%s3 + $0x8] sm:$0xff]
    %v792 = vld [vmem:[%s3 + $0x10] sm:$0xff]
    %v793 = vld [vmem:[%s3 + $0x18] sm:$0xff]
    %v794 = vld [vmem:[%s3 + $0x20] sm:$0xff]
    %v795 = vld [vmem:[%s3 + $0x28] sm:$0xff]
    %v796 = vld [vmem:[%s3 + $0x30] sm:$0xff]
    %v797 = vld [vmem:[%s3 + $0x38] sm:$0xff]
    %v798 = vld [vmem:[%s3 + $0x40] sm:$0xff]
    %v799 = vld [vmem:[%s3 + $0x48] sm:$0xff]
    %v800 = vld [vmem:[%s3 + $0x50] sm:$0xff]
    %v801 = vld [vmem:[%s3 + $0x58] sm:$0xff]
    %v802 = vld [vmem:[%s3 + $0x60] sm:$0xff]
    %v803 = vld [vmem:[%s3 + $0x68] sm:$0xff]
    %v804 = vld [vmem:[%s3 + $0x70] sm:$0xff]
    %v805 = vld [vmem:[%s3 + $0x78] sm:$0xff]
    %v806 = vld [vmem:[#allocation8] sm:$0x1]
    %v808 = vperm.slane %v806, 0
    %810 = vmatpush.msra.mxu0 %v805
    %811 = vmatpush.msra.mxu0 %v804
    %812 = vmatpush.msra.mxu0 %v803
    %813 = vmatpush.msra.mxu0 %v802
    %814 = vmatpush.msra.mxu0 %v801
    %815 = vmatpush.msra.mxu0 %v800
    %816 = vmatpush.msra.mxu0 %v799
    %817 = vmatpush.msra.mxu0 %v798
    %818 = vmatpush.msra.mxu0 %v797
    %819 = vmatpush.msra.mxu0 %v796
    %820 = vmatpush.msra.mxu0 %v795
    %821 = vmatpush.msra.mxu0 %v794
    %822 = vmatpush.msra.mxu0 %v793
    %823 = vmatpush.msra.mxu0 %v792
    %824 = vmatpush.msra.mxu0 %v791
    %825 = vmatpush.msra.mxu0 %v790
    %826 = vmatmul.f32.gmra.mxu0 %v789
    %v827 = vpop.f32.mrf.mxu0
    %v828 = vadd.f32 %v808, %v827
    %829 = vdwg.mxu0
    %vm830 = vcmask 82944
    %v831 = vsel %vm830, %v828, -inf
    %832 = vmax.xlane.f32.xlu0 %v831
    %v833 = vpop.xlane.xlu0 %832
    %v834 = vsub.f32 %v828, %v833
    %v835 = vmul.f32 %v834, 1.442695
    %v836 = vpow.pop %v835
    %v837 = vsel %vm830, %v836, 0.0
    %838 = vadd.xlane.f32.xlu0 %v837
    %v839 = vpop.xlane.xlu0 %838
    %v840 = vrcp.pop %v839
    %v841 = vmul.f32 %v839, %v840
    %v842 = vsub.f32 1.0, %v841
    %v843 = vmul.f32 %v840, %v842
    %v844 = vadd.f32 %v840, %v843
    %vm845 = vweird.f32 %v839
    %vm846 = vweird.f32 %v840
    %vm847 = vmor %vm845, %vm846
    %v848 = vsel %vm847, %v840, %v844
    %v849 = vand.u32 2147483647, %v839
    %vm850 = vcmp.eq.f32.partialorder %v849, 8.507059e+37
    %v851 = vand.u32 %v839, 2147483648
    %v852 = vor.u32 1.1754944e-38, %v851
    %v853 = vsel %vm850, %v852, %v848
    %v854 = vmul.f32 %v836, %v853
    %855 = vst.msk [vmem:[#allocation10] sm:$0x3] %vm830, %v854
    // Predicated region
    $region38: #{tpu_custom_call.1} parent=1 // pred_check
      _
    $region39: #{tpu_custom_call.1} parent=1 // pred_check_branch
      %857 = sbr.rel (0) target = $region41
    $region40: #{tpu_custom_call.1} parent=1 // pred_region
      %859 = vsyncadd [#allocation4], 0
      %s861 = sshll.u32 [#allocation10], 4
      %s862 = int_to_ptr.vmem [resolvable:$true] %s861
      %s863 = sshll.u32 %s5, 4
      %s864 = int_to_ptr.hbm [resolvable:$true] %s863
      %866 = dma.vmem_to_hbm [thread:$0]  %s862, 32, %s864, [#allocation4]
    $region41: #{tpu_custom_call.1} parent=1 // pred_fallthru
      _
    // Predicated region
    $region42: #{tpu_custom_call.1} parent=1 // pred_check
      _
    $region43: #{tpu_custom_call.1} parent=1 // pred_check_branch
      %868 = sbr.rel (0) target = $region45
    $region44: #{tpu_custom_call.1} parent=1 // pred_region
      %870 = dma.done [#allocation4], 32
    $region45: #{tpu_custom_call.1} parent=1 // pred_fallthru
      _
    %871 = vsyncpa [#allocation3], 1
    %872 = vsyncpa [#allocation6], 1
    %873 = vsyncpa [#allocation9], 1
    %874 = vsyncpa [#allocation4], 1

</llo_original>
